<compile_context>
chip_gen: v7x
topology: tpu7x:2x2x1
jax: 0.10.0
libtpu: 0.0.40
codegen_flags: <defaults>
</compile_context>

<pallas_src>
import functools

import jax
import jax.numpy as jnp
from jax.experimental import pallas as pl
from jax.experimental.pallas import tpu as pltpu

_TILE_BUDGET = 8 * 1024 * 1024   # lane-padded VMEM bytes per input block (per buffer)
_SLAB_BUDGET = 2 * 1024 * 1024   # f32 bytes per in-kernel compute slab


def _round_up(x, m):
    return ((x + m - 1) // m) * m


def _pow_p(x, p):
    """x ** p for x > 0 (f32). Small integer p -> VPU multiply chain (no EUP)."""
    pf = float(p)
    if pf.is_integer() and 1 <= int(pf) <= 8:
        xp = x
        for _ in range(int(pf) - 1):
            xp = xp * x
        return xp
    return jnp.exp(jnp.float32(pf) * jnp.log(x))


def _finalize(s, p, hw, out_dtype):
    """s: (r, 1) f32 sum of clamped powers -> GeM output."""
    m = s * jnp.float32(1.0 / hw)                      # adaptive_avg_pool2d(., 1)
    return jnp.exp(jnp.float32(1.0 / p) * jnp.log(m)).astype(out_dtype)  # ** (1/p)


def _gem_kernel_single(x_ref, o_ref, *, p, eps, hw, row_group):
    """hw fits in one block: reduce + finalize immediately, chunked over row groups."""
    rows_block = x_ref.shape[0]
    for g in range(rows_block // row_group):           # static, sublane-aligned slices
        r0, r1 = g * row_group, (g + 1) * row_group
        x = x_ref[r0:r1, :].astype(jnp.float32)        # upcast before the power chain
        x = jnp.maximum(x, jnp.float32(eps))           # clamp(min=eps)
        s = jnp.sum(_pow_p(x, p), axis=-1, keepdims=True)
        o_ref[r0:r1, :] = _finalize(s, p, hw, o_ref.dtype)


def _gem_kernel_multi(x_ref, o_ref, acc_ref, *, p, eps, hw, hw_block, num_hw_tiles):
    """hw tiled along the grid's last ("arbitrary") axis; lane-wide f32 accumulator."""
    k = pl.program_id(1)

    @pl.when(k == 0)
    def _():
        acc_ref[...] = jnp.zeros_like(acc_ref)

    def accumulate(valid):
        acc = acc_ref[...]
        for j in range(pl.cdiv(valid, 128)):           # static 128-lane chunks
            xj = x_ref[:, j * 128:(j + 1) * 128].astype(jnp.float32)
            xj = jnp.maximum(xj, jnp.float32(eps))
            xpj = _pow_p(xj, p)
            tail = valid - j * 128
            if tail < 128:                             # only the straddling tail chunk
                lane = jax.lax.broadcasted_iota(jnp.int32, xpj.shape, 1)
                xpj = jnp.where(lane < tail, xpj, jnp.float32(0.0))
            acc = acc + xpj                            # pure VPU adds, no XLU
        acc_ref[...] = acc

    last_valid = hw - (num_hw_tiles - 1) * hw_block
    if last_valid == hw_block:                         # hw_block divides hw: never mask
        accumulate(hw_block)
    else:                                              # mask only on the last hw tile
        @pl.when(k < num_hw_tiles - 1)
        def _():
            accumulate(hw_block)

        @pl.when(k == num_hw_tiles - 1)
        def _():
            accumulate(last_valid)

    @pl.when(k == num_hw_tiles - 1)
    def _():
        # Single cross-lane (XLU) reduce per row tile, deferred out of the hot loop.
        s = jnp.sum(acc_ref[...], axis=-1, keepdims=True)
        o_ref[...] = _finalize(s, p, hw, o_ref.dtype)


def _choose_tiles(rows, hw, itemsize, tile_budget=_TILE_BUDGET):
    """Returns (rows_block, hw_block, row_group) honoring (sublane, 128) tiling."""
    sub = max(8, 32 // itemsize)                       # 8 (f32), 16 (bf16), 32 (int8)
    hw_pad_full = _round_up(hw, 128)

    if sub * hw_pad_full * itemsize <= tile_budget:
        hw_block, hw_pad = hw, hw_pad_full             # full reduction axis in one block
    else:
        max_hw_block = max(128, (tile_budget // (sub * itemsize)) // 128 * 128)
        hw_block = max_hw_block
        # Prefer a multiple of 128 dividing hw (no tail mask), but don't shrink
        # below half the budget just to avoid the mask.
        for cand in range(max_hw_block, max(127, max_hw_block // 2 - 1), -128):
            if hw % cand == 0:
                hw_block = cand
                break
        hw_pad = hw_block

    # Row block: fill the padded-VMEM budget (no artificial cap).
    rows_block = max(sub, (tile_budget // (hw_pad * itemsize)) // sub * sub)
    if rows_block >= rows:
        # Guarantee >= 2 row tiles whenever rows can be split, so the "parallel"
        # axis shards across both v7x TensorCores.
        rows_block = _round_up(-(-rows // 2), sub) if rows > sub else rows

    # In-kernel row grouping (single-hw-tile kernel): keep f32 slabs ~2 MiB.
    row_group = max(sub, (_SLAB_BUDGET // (hw_pad * 4)) // sub * sub)
    if row_group >= rows_block:
        row_group = rows_block
    else:
        rows_block = (rows_block // row_group) * row_group  # row_group | rows_block
    return rows_block, hw_block, row_group


def generalized_mean_pooling(x, p=3.0, eps=1e-6, *, tile_budget_bytes=None):
    """x: (N, C, H, W) -> (N, C, 1, 1). GeM pooling with output_size=1."""
    # TODO(synk): only output_size=1 (the module default, global GeM) is implemented.
    assert float(p) > 0.0, "GeM norm must be > 0"
    N, C, H, W = x.shape
    rows, hw = N * C, H * W
    x2d = x.reshape(rows, hw)
    itemsize = jnp.dtype(x.dtype).itemsize
    budget = _TILE_BUDGET if tile_budget_bytes is None else int(tile_budget_bytes)

    rows_block, hw_block, row_group = _choose_tiles(rows, hw, itemsize, budget)
    num_row_tiles = pl.cdiv(rows, rows_block)
    num_hw_tiles = pl.cdiv(hw, hw_block)

    p_is_int = float(p).is_integer() and 1 <= int(p) <= 8
    cost = pl.CostEstimate(
        flops=rows * hw * ((int(p) + 1) if p_is_int else 3),
        transcendentals=2 * rows + (0 if p_is_int else 2 * rows * hw),
        bytes_accessed=rows * hw * itemsize + rows * itemsize,
    )
    vmem_limit = 48 * 1024 * 1024   # fits v7x's 64 MiB physical VMEM with headroom

    if num_hw_tiles == 1:
        kernel = functools.partial(_gem_kernel_single, p=float(p), eps=float(eps),
                                   hw=hw, row_group=row_group)
        out2d = pl.pallas_call(
            kernel,
            out_shape=jax.ShapeDtypeStruct((rows, 1), x.dtype),
            grid_spec=pltpu.PrefetchScalarGridSpec(
                num_scalar_prefetch=0,
                grid=(num_row_tiles,),
                in_specs=[pl.BlockSpec((rows_block, hw), lambda i: (i, 0))],
                out_specs=pl.BlockSpec((rows_block, 1), lambda i: (i, 0)),
            ),
            compiler_params=pltpu.CompilerParams(
                dimension_semantics=("parallel",), vmem_limit_bytes=vmem_limit),
            cost_estimate=cost,
        )(x2d)
    else:
        kernel = functools.partial(_gem_kernel_multi, p=float(p), eps=float(eps),
                                   hw=hw, hw_block=hw_block,
                                   num_hw_tiles=num_hw_tiles)
        out2d = pl.pallas_call(
            kernel,
            out_shape=jax.ShapeDtypeStruct((rows, 1), x.dtype),
            grid_spec=pltpu.PrefetchScalarGridSpec(
                num_scalar_prefetch=0,
                grid=(num_row_tiles, num_hw_tiles),
                in_specs=[pl.BlockSpec((rows_block, hw_block), lambda i, k: (i, k))],
                out_specs=pl.BlockSpec((rows_block, 1), lambda i, k: (i, 0)),
                scratch_shapes=[pltpu.VMEM((rows_block, 128), jnp.float32)],
            ),
            compiler_params=pltpu.CompilerParams(
                dimension_semantics=("parallel", "arbitrary"),
                vmem_limit_bytes=vmem_limit),
            cost_estimate=cost,
        )(x2d)

    return out2d.reshape(N, C, 1, 1)


def _reference(x, p, eps):
    return jnp.power(
        jnp.mean(jnp.power(jnp.maximum(x, eps), p), axis=(2, 3), keepdims=True),
        1.0 / p)


if __name__ == "__main__":
    key = jax.random.PRNGKey(0)
    p, eps = 3.0, 1e-6   # GeM norm (module arg `norm`), deterministic in-script

    # 1) Default path (hw fits one block; ResNet-style global GeM).
    N, C, H, W = 2, 4, 16, 16
    x = jax.random.normal(key, (N, C, H, W), dtype=jnp.float32)
    out = jax.block_until_ready(generalized_mean_pooling(x, p=p, eps=eps))
    ref = _reference(x, p, eps)
    assert out.shape == (N, C, 1, 1)
    assert jnp.allclose(out, ref, atol=1e-5, rtol=1e-5)

    # 2) Force the hw-tiled (multi-step accumulator) kernel with a tiny tile
    #    budget: hw_block divides hw (unmasked path).
    k2 = jax.random.PRNGKey(1)
    x2 = jax.random.normal(k2, (2, 4, 32, 32), dtype=jnp.float32)   # hw = 1024
    out2 = jax.block_until_ready(
        generalized_mean_pooling(x2, p=p, eps=eps, tile_budget_bytes=16 * 1024))
    assert jnp.allclose(out2, _reference(x2, p, eps), atol=1e-5, rtol=1e-5)

    # 3) Force the hw-tiled kernel with a ragged last hw tile (masked path).
    k3 = jax.random.PRNGKey(2)
    x3 = jax.random.normal(k3, (2, 4, 30, 30), dtype=jnp.float32)   # hw = 900
    out3 = jax.block_until_ready(
        generalized_mean_pooling(x3, p=p, eps=eps, tile_budget_bytes=16 * 1024))
    assert jnp.allclose(out3, _reference(x3, p, eps), atol=1e-5, rtol=1e-5)

    print("KERNEL_OK")
</pallas_src>

<mosaic_0001>
module attributes {stable_mosaic.version = 11 : i64} {
  func.func @_gem_kernel_single(%arg0: i32, %arg1: memref<8x256xf32, #tpu.memory_space<vmem>>, %arg2: memref<8x1xf32, #tpu.memory_space<vmem>>) attributes {dimension_semantics = [#tpu.dimension_semantics<parallel>], iteration_bounds = array<i64: 1>, scalar_prefetch = 0 : i64, scratch_operands = 0 : i64, tpu.core_type = #tpu.core_type<tc>, window_params = [{transform_indices = @transform_0, window_bounds = array<i64: 8, 256>}, {transform_indices = @transform_1, window_bounds = array<i64: 8, 1>}]} {
    %c0 = arith.constant 0 : index
    %c0_0 = arith.constant 0 : index
    %0 = vector.load %arg1[%c0, %c0_0] : memref<8x256xf32, #tpu.memory_space<vmem>>, vector<8x256xf32>
    %cst = arith.constant 9.99999997E-7 : f32
    %1 = vector.broadcast %cst : f32 to vector<8x256xf32>
    %2 = arith.maximumf %0, %1 : vector<8x256xf32>
    %3 = arith.mulf %2, %2 : vector<8x256xf32>
    %4 = arith.mulf %3, %2 : vector<8x256xf32>
    %cst_1 = arith.constant dense<0.000000e+00> : vector<8xf32>
    %5 = vector.multi_reduction <add>, %4, %cst_1 [1] : vector<8x256xf32> to vector<8xf32>
    %6 = vector.shape_cast %5 : vector<8xf32> to vector<8x1xf32>
    %cst_2 = arith.constant 3.906250e-03 : f32
    %7 = vector.broadcast %cst_2 : f32 to vector<8x1xf32>
    %8 = arith.mulf %6, %7 : vector<8x1xf32>
    %9 = math.log %8 : vector<8x1xf32>
    %cst_3 = arith.constant 0.333333343 : f32
    %10 = vector.broadcast %cst_3 : f32 to vector<8x1xf32>
    %11 = arith.mulf %10, %9 : vector<8x1xf32>
    %12 = math.exp %11 : vector<8x1xf32>
    %c0_4 = arith.constant 0 : index
    %c0_5 = arith.constant 0 : index
    %13 = vector.load %arg2[%c0_4, %c0_5] : memref<8x1xf32, #tpu.memory_space<vmem>>, vector<8x1xf32>
    tpu.vector_store %arg2[%c0_4, %c0_5], %12 {strides = array<i32>} : memref<8x1xf32, #tpu.memory_space<vmem>>, vector<8x1xf32>,
    return
  }
  func.func @transform_0(%arg0: i32) -> (i32, i32) {
    %c0_i32 = arith.constant 0 : i32
    %c0_i32_0 = arith.constant 0 : i32
    return %arg0, %c0_i32 : i32, i32
  }
  func.func @transform_1(%arg0: i32) -> (i32, i32) {
    %c0_i32 = arith.constant 0 : i32
    %c0_i32_0 = arith.constant 0 : i32
    return %arg0, %c0_i32 : i32, i32
  }
}

</mosaic_0001>

<llo_original>
// kernel: tpu_custom_call.1
$region0: #{tpu_custom_call.1}
  #allocation0 [shape = 'u32[]', space=smem, size = 0x4, offset = 0x4, fixed_abs, tag = 'smem constant byte address 0x4 - core index']
  #allocation1 [shape = 'u32[144,128]{1,0:T(1,128)}', space=vmem, size = 0x12000, scoped, tag = 'internal scratch']
  %s0 = inlined_call_operand.hbm [shape: f32[8,256], index: 0, kind: input, shape index: {}]
  %s1 = inlined_call_operand.vmem [shape: f32[8,1], index: 1, kind: output, shape index: {}]
  %s2 = sld [smem:[#allocation0]]
  $region18: #{tpu_custom_call.1} parent=0
    _
  %s4 = ssub.s32 1, %s2
  %s5 = scalar_select 0, %s4, %s2
  $region1: #{tpu_custom_call.1} parent=0
    #allocation2 [shape = 'u8[8192]{0}', space=vmem, size = 0x2000, scoped, tag = 'input window, operand 0, single buffered']
    #allocation3 [shape = 's32[1]{0}', space=sflag, size = 0x4, scoped, tag = 'scoped memory for tpu_custom_call.1']
    %6 = vsyncpa [#allocation3], 0
    // Predicated region
    $region2: #{tpu_custom_call.1} parent=1 // pred_check
      _
    $region3: #{tpu_custom_call.1} parent=1 // pred_check_branch
      %8 = sbr.rel (0) target = $region5
    $region4: #{tpu_custom_call.1} parent=1 // pred_region
      %s10 = ssub.s32 256, 256
      %11 = vsyncadd [#allocation3], %s10
      %s13 = sshll.u32 [#allocation2], 4
      %s14 = int_to_ptr.vmem [resolvable:$true] %s13
      %16 = dma.hbm_to_vmem [thread:$0]  %s0, 256, %s14, [#allocation3]
    $region5: #{tpu_custom_call.1} parent=1 // pred_fallthru
      _
    // Predicated region
    $region6: #{tpu_custom_call.1} parent=1 // pred_check
      _
    $region7: #{tpu_custom_call.1} parent=1 // pred_check_branch
      %18 = sbr.rel (0) target = $region9
    $region8: #{tpu_custom_call.1} parent=1 // pred_region
      %19 = dma.done [#allocation3], 256
    $region9: #{tpu_custom_call.1} parent=1 // pred_fallthru
      _
    %v20 = vld [vmem:[#allocation2] sm:$0xff]
    %v21 = vld [vmem:[#allocation2 + $0x8] sm:$0xff]
    %v22 = vmax.f32 %v20, 1e-06
    %v23 = vmax.f32 %v21, 1e-06
    %v24 = vmul.f32 %v22, %v22
    %v25 = vmul.f32 %v23, %v23
    %v26 = vmul.f32 %v24, %v22
    %v27 = vmul.f32 %v25, %v23
    %v28 = vadd.f32 %v26, %v27
    %29 = vadd.xlane.f32.xlu0 %v28
    %v30 = vpop.xlane.xlu0 %29
    %v31 = vmul.f32 %v30, 0.00390625
    %v32 = vlog2.pop %v31
    %v33 = vmul.f32 %v32, 0.6931472
    %v34 = vmul.f32 %v33, 0.33333334
    %v35 = vmul.f32 %v34, 1.442695
    %v36 = vpow.pop %v35
    %vm37 = vcmask 7168
    %38 = vst.msk [vmem:[%s1] sm:$0xff] %vm37, %v36
    // Predicated region
    $region10: #{tpu_custom_call.1} parent=1 // pred_check
      _
    $region11: #{tpu_custom_call.1} parent=1 // pred_check_branch
      %40 = sbr.rel (0) target = $region13
    $region12: #{tpu_custom_call.1} parent=1 // pred_region
      _
    $region13: #{tpu_custom_call.1} parent=1 // pred_fallthru
      _
    // Predicated region
    $region14: #{tpu_custom_call.1} parent=1 // pred_check
      _
    $region15: #{tpu_custom_call.1} parent=1 // pred_check_branch
      %42 = sbr.rel (0) target = $region17
    $region16: #{tpu_custom_call.1} parent=1 // pred_region
      _
    $region17: #{tpu_custom_call.1} parent=1 // pred_fallthru
      _
    %43 = vsyncpa [#allocation3], 1

</llo_original>
